<compile_context>
chip_gen: v7x
topology: tpu7x:2x2x1
jax: 0.10.0
libtpu: 0.0.40
codegen_flags: <defaults>
</compile_context>

<pallas_src>
import jax
import jax.numpy as jnp
from jax.experimental import pallas as pl
from jax.experimental.pallas import tpu as pltpu


def _diff1_forward_kernel(u_ref, w_ref, o_ref):
    # u_ref: (TV, Z), w_ref: (3, Z), o_ref: (TV, Z)
    u = u_ref[...]
    # Periodic shifts along the last (lane) axis via XLU lane rotates:
    #   u_m1[v, z] = u[v, (z-1) % Z],  u_m2[v, z] = u[v, (z-2) % Z]
    u_m1 = pltpu.roll(u, 1, axis=1)
    u_m2 = pltpu.roll(u, 2, axis=1)
    # Keep the weight rows as 2-D (1, Z) static slices (zero-cost views that
    # broadcast along sublanes) instead of 1-D index + [None, :].
    w0 = w_ref[0:1, :]
    w1 = w_ref[1:2, :]
    w2 = w_ref[2:3, :]
    o_ref[...] = w0 * u_m2 + w1 * u_m1 + w2 * u


def make_weights_all(z_vector):
    """Replicates the module's __init__ exactly: returns (Z, 3) weights."""
    z_vector = jnp.asarray(z_vector, dtype=jnp.float32)
    L = z_vector.shape[0]
    dz = z_vector[1] - z_vector[0]
    dz_m1 = jnp.full((L,), dz, dtype=jnp.float32)
    dz_m2 = jnp.full((L,), dz, dtype=jnp.float32)
    factor = -dz_m1 * (dz_m1 + dz_m2) / dz_m2
    w0 = -factor / (dz_m2 + dz_m1) ** 2
    w1 = factor / dz_m1 ** 2
    w2 = factor / (dz_m2 + dz_m1) ** 2 - factor / dz_m1 ** 2
    return jnp.stack([w0, w1, w2], axis=1)  # (Z, 3)


def _choose_tile_v(V, Z, itemsize=4, vmem_budget_bytes=24 * 1024 * 1024):
    """Pick a V-tile so double-buffered (u tile + out tile) fits the budget.

    Budget of ~24 MiB stays under the default scoped-VMEM limits on all of
    v5e (after raising vmem_limit_bytes) / v6e / v7x (64 MiB physical).
    """
    per_row = 4 * Z * itemsize  # 2 buffers x (input + output) per row
    tv = max(8, vmem_budget_bytes // per_row)
    tv = min(tv, 512)
    tv = max(8, (tv // 8) * 8)  # sublane-aligned
    return min(tv, V)


def order2_diff1_unstructure_period_forward(u, weights_all, *, tile_v=None):
    """u: (V, Z) float32; weights_all: (Z, 3) float32 -> (V, Z) float32."""
    V, Z = u.shape
    w_t = weights_all.T.astype(u.dtype)  # (3, Z); glue transpose outside kernel
    if tile_v is None:
        tile_v = _choose_tile_v(V, Z, jnp.dtype(u.dtype).itemsize)
    tile_v = max(1, min(tile_v, V))
    grid = (pl.cdiv(V, tile_v),)
    return pl.pallas_call(
        _diff1_forward_kernel,
        out_shape=jax.ShapeDtypeStruct((V, Z), u.dtype),
        grid=grid,
        in_specs=[
            pl.BlockSpec((tile_v, Z), lambda i: (i, 0)),   # u: tiled over V
            pl.BlockSpec((3, Z), lambda i: (0, 0)),        # weights: resident
        ],
        out_specs=pl.BlockSpec((tile_v, Z), lambda i: (i, 0)),
        compiler_params=pltpu.CompilerParams(
            dimension_semantics=("parallel",),
            vmem_limit_bytes=64 * 1024 * 1024,
        ),
    )(u, w_t)


def _reference(u, weights_all):
    # Mirrors torch: stack([u_m2, u_m1, u], -1) then einsum('vzt,zt->vz', ...)
    u_m1 = jnp.roll(u, 1, axis=1)
    u_m2 = jnp.roll(u, 2, axis=1)
    u_pad = jnp.stack([u_m2, u_m1, u], axis=2)  # (V, Z, 3)
    return jnp.einsum("vzt,zt->vz", u_pad, weights_all)


if __name__ == "__main__":
    # Small shapes consistent with the module: V variables, Z periodic points.
    # Z=128 keeps the output block lane-dense (multiple of 128).
    V, Z = 16, 128
    key = jax.random.PRNGKey(0)
    u = jax.random.normal(key, (V, Z), dtype=jnp.float32)

    z_vector = jnp.linspace(0.0, 1.0, Z, dtype=jnp.float32)
    weights_all = make_weights_all(z_vector)  # (Z, 3)

    # tile_v=8 forces a multi-step grid even at this small size, exercising the
    # double-buffered pipeline; production calls can leave tile_v=None (auto).
    out = order2_diff1_unstructure_period_forward(u, weights_all, tile_v=8)
    out = jax.block_until_ready(out)

    ref = _reference(u, weights_all)
    assert out.shape == (V, Z)
    assert jnp.allclose(out, ref, rtol=1e-5, atol=1e-3), "mismatch vs reference"

    print("KERNEL_OK")
</pallas_src>

<mosaic_0001>
module attributes {stable_mosaic.version = 11 : i64} {
  func.func @_diff1_forward_kernel(%arg0: i32, %arg1: memref<8x128xf32, #tpu.memory_space<vmem>>, %arg2: memref<3x128xf32, #tpu.memory_space<vmem>>, %arg3: memref<8x128xf32, #tpu.memory_space<vmem>>) attributes {dimension_semantics = [#tpu.dimension_semantics<parallel>], iteration_bounds = array<i64: 2>, scalar_prefetch = 0 : i64, scratch_operands = 0 : i64, tpu.core_type = #tpu.core_type<tc>, window_params = [{transform_indices = @transform_0, window_bounds = array<i64: 8, 128>}, {pipeline_mode = #tpu.pipeline_mode<synchronous>, transform_indices = @transform_1, window_bounds = array<i64: 3, 128>}, {transform_indices = @transform_2, window_bounds = array<i64: 8, 128>}]} {
    %c0 = arith.constant 0 : index
    %c0_0 = arith.constant 0 : index
    %0 = vector.load %arg1[%c0, %c0_0] : memref<8x128xf32, #tpu.memory_space<vmem>>, vector<8x128xf32>
    %c1_i32 = arith.constant 1 : i32
    %1 = tpu.dynamic_rotate %0 by %c1_i32 dim 1 : vector<8x128xf32>, i32 -> vector<8x128xf32>
    %c2_i32 = arith.constant 2 : i32
    %2 = tpu.dynamic_rotate %0 by %c2_i32 dim 1 : vector<8x128xf32>, i32 -> vector<8x128xf32>
    %c0_1 = arith.constant 0 : index
    %c0_2 = arith.constant 0 : index
    %3 = vector.load %arg2[%c0_1, %c0_2] : memref<3x128xf32, #tpu.memory_space<vmem>>, vector<1x128xf32>
    %c1 = arith.constant 1 : index
    %c0_3 = arith.constant 0 : index
    %4 = vector.load %arg2[%c1, %c0_3] : memref<3x128xf32, #tpu.memory_space<vmem>>, vector<1x128xf32>
    %c2 = arith.constant 2 : index
    %c0_4 = arith.constant 0 : index
    %5 = vector.load %arg2[%c2, %c0_4] : memref<3x128xf32, #tpu.memory_space<vmem>>, vector<1x128xf32>
    %6 = vector.broadcast %3 : vector<1x128xf32> to vector<8x128xf32>
    %7 = arith.mulf %6, %2 : vector<8x128xf32>
    %8 = vector.broadcast %4 : vector<1x128xf32> to vector<8x128xf32>
    %9 = arith.mulf %8, %1 : vector<8x128xf32>
    %10 = arith.addf %7, %9 : vector<8x128xf32>
    %11 = vector.broadcast %5 : vector<1x128xf32> to vector<8x128xf32>
    %12 = arith.mulf %11, %0 : vector<8x128xf32>
    %13 = arith.addf %10, %12 : vector<8x128xf32>
    %c0_5 = arith.constant 0 : index
    %c0_6 = arith.constant 0 : index
    %14 = vector.load %arg3[%c0_5, %c0_6] : memref<8x128xf32, #tpu.memory_space<vmem>>, vector<8x128xf32>
    tpu.vector_store %arg3[%c0_5, %c0_6], %13 {strides = array<i32>} : memref<8x128xf32, #tpu.memory_space<vmem>>, vector<8x128xf32>,
    return
  }
  func.func @transform_0(%arg0: i32) -> (i32, i32) {
    %c0_i32 = arith.constant 0 : i32
    %c0_i32_0 = arith.constant 0 : i32
    return %arg0, %c0_i32 : i32, i32
  }
  func.func @transform_1(%arg0: i32) -> (i32, i32) {
    %c0_i32 = arith.constant 0 : i32
    %c0_i32_0 = arith.constant 0 : i32
    %c0_i32_1 = arith.constant 0 : i32
    return %c0_i32, %c0_i32_0 : i32, i32
  }
  func.func @transform_2(%arg0: i32) -> (i32, i32) {
    %c0_i32 = arith.constant 0 : i32
    %c0_i32_0 = arith.constant 0 : i32
    return %arg0, %c0_i32 : i32, i32
  }
}

</mosaic_0001>

<llo_original>
// kernel: tpu_custom_call.1
$region0: #{tpu_custom_call.1}
  #allocation0 [shape = 'u32[]', space=smem, size = 0x4, offset = 0x4, fixed_abs, tag = 'smem constant byte address 0x4 - core index']
  #allocation1 [shape = 'u32[144,128]{1,0:T(1,128)}', space=vmem, size = 0x12000, scoped, tag = 'internal scratch']
  %s0 = inlined_call_operand.hbm [shape: f32[16,128], index: 0, kind: input, shape index: {}]
  %s1 = inlined_call_operand.hbm [shape: f32[3,128], index: 1, kind: input, shape index: {}]
  %s2 = inlined_call_operand.hbm [shape: f32[16,128], index: 2, kind: output, shape index: {}]
  %s3 = sld [smem:[#allocation0]]
  $region49: #{tpu_custom_call.1} parent=0
    _
  %s5 = ssub.s32 1, %s3
  %s6 = scalar_select 0, %s5, %s3
  $region1: #{tpu_custom_call.1} parent=0
    #allocation2 [shape = 'u8[8192]{0}', space=vmem, size = 0x2000, scoped, tag = 'input window, operand 0']
    #allocation3 [shape = 's32[2]{0}', space=sflag, size = 0x8, scoped, tag = 'scoped memory for tpu_custom_call.1']
    #allocation4 [shape = 's32[2]{0}', space=sflag, size = 0x8, scoped, tag = 'scoped memory for tpu_custom_call.1']
    #allocation5 [shape = 'u8[2048]{0}', space=vmem, size = 0x800, scoped, tag = 'input window, operand 1, single buffered']
    #allocation6 [shape = 's32[1]{0}', space=sflag, size = 0x4, scoped, tag = 'scoped memory for tpu_custom_call.1']
    #allocation7 [shape = 'u8[8192]{0}', space=vmem, size = 0x2000, scoped, tag = 'output window, operand 0']
    %7 = vsyncpa [#allocation3], 0
    %s8 = scalar_lea.sflag [#allocation3], 1
    %9 = vsyncpa %s8, 0
    %10 = vsyncpa [#allocation6], 0
    %11 = vsyncpa [#allocation4], 0
    %s12 = scalar_lea.sflag [#allocation4], 1
    %13 = vsyncpa %s12, 0
    loop: start=0, step=1, limit=4
    $region2: #{tpu_custom_call.1} parent=1 // loop_pre_header
      _
    $region3: #{tpu_custom_call.1} parent=1 // loop_header
      %s15 = sphi 0, %s19
      %p16 = scmp.ge.s32.totalorder %s15, 4
      %s25 = sphi 0, %s27
      %s28 = sphi 0, %s25
      %s29 = sphi 0, %s28
      %s45 = sphi 0, %s29
      %s49 = sphi 0, %s49
      %s51 = sphi 0, %s49
      %s52 = sphi 0, %s51
      %s66 = sphi 0, %s52
      %s72 = sphi 0, %s74
      %s75 = sphi 0, %s72
      %s76 = sphi 0, %s75
      %s92 = sphi 0, %s76
    $region4: #{tpu_custom_call.1} parent=1 // loop_header_branch
      %18 = sbr.rel (%p16) target = $region8
    $region5: #{tpu_custom_call.1} parent=1 // loop_body
      %s20 = ssub.s32 %s15, 1
      %s21 = ssub.s32 %s15, 2
      %s22 = sadd.s32 %s15, 1
      %s23 = ssub.s32 %s15, %s22
      %p24 = scmp.eq.s32.totalorder %s23, 0
      %s26 = sadd.s32 %s25, 1
      %s27 = scalar_select %p24, %s25, %s26
      %p30 = pneg %p24
      %p31 = scmp.eq.s32.totalorder %s15, 1
      %p32 = por %p30, %p31
      %p33 = scmp.ne.s32.totalorder %s25, %s28
      %p34 = scmp.eq.s32.totalorder %s15, 0
      %p35 = por %p33, %p34
      %p36 = scmp.ne.s32.totalorder %s25, %s28
      %p37 = scmp.eq.s32.totalorder %s20, 1
      %p38 = por %p36, %p37
      %p39 = scmp.ne.s32.totalorder %s28, %s29
      %p40 = scmp.eq.s32.totalorder %s20, 0
      %p41 = por %p39, %p40
      %p42 = scmp.ne.s32.totalorder %s28, %s29
      %p43 = scmp.eq.s32.totalorder %s21, 1
      %p44 = por %p42, %p43
      %p46 = scmp.ne.s32.totalorder %s29, %s45
      %p47 = scmp.eq.s32.totalorder %s21, 0
      %p48 = por %p46, %p47
      %s50 = sadd.s32 %s49, 1
      %p53 = scmp.eq.s32.totalorder %s15, 1
      %p54 = scmp.ne.s32.totalorder %s49, %s51
      %p55 = scmp.eq.s32.totalorder %s15, 0
      %p56 = por %p54, %p55
      %p57 = scmp.ne.s32.totalorder %s49, %s51
      %p58 = scmp.eq.s32.totalorder %s20, 1
      %p59 = por %p57, %p58
      %p60 = scmp.ne.s32.totalorder %s51, %s52
      %p61 = scmp.eq.s32.totalorder %s20, 0
      %p62 = por %p60, %p61
      %p63 = scmp.ne.s32.totalorder %s51, %s52
      %p64 = scmp.eq.s32.totalorder %s21, 1
      %p65 = por %p63, %p64
      %p67 = scmp.ne.s32.totalorder %s52, %s66
      %p68 = scmp.eq.s32.totalorder %s21, 0
      %p69 = por %p67, %p68
      %s70 = ssub.s32 %s15, %s22
      %p71 = scmp.eq.s32.totalorder %s70, 0
      %s73 = sadd.s32 %s72, 1
      %s74 = scalar_select %p71, %s72, %s73
      %p77 = pneg %p71
      %p78 = scmp.eq.s32.totalorder %s15, 1
      %p79 = por %p77, %p78
      %p80 = scmp.ne.s32.totalorder %s72, %s75
      %p81 = scmp.eq.s32.totalorder %s15, 0
      %p82 = por %p80, %p81
      %p83 = scmp.ne.s32.totalorder %s72, %s75
      %p84 = scmp.eq.s32.totalorder %s20, 1
      %p85 = por %p83, %p84
      %p86 = scmp.ne.s32.totalorder %s75, %s76
      %p87 = scmp.eq.s32.totalorder %s20, 0
      %p88 = por %p86, %p87
      %p89 = scmp.ne.s32.totalorder %s75, %s76
      %p90 = scmp.eq.s32.totalorder %s21, 1
      %p91 = por %p89, %p90
      %p93 = scmp.ne.s32.totalorder %s76, %s92
      %p94 = scmp.eq.s32.totalorder %s21, 0
      %p95 = por %p93, %p94
      %p96 = scmp.le.s32.totalorder 1, %s15
      %p97 = scmp.lt.s32.totalorder %s15, 3
      %p98 = pnand %p96, %p97
      %p99 = pneg %p98
      // Predicated region
      $region9: #{tpu_custom_call.1} parent=5 // pred_check
        _
      $region10: #{tpu_custom_call.1} parent=5 // pred_check_branch
        %101 = sbr.rel (%p98) target = $region12
      $region11: #{tpu_custom_call.1} parent=5 // pred_region
        %s102 = ssub.s32 %s15, 1
        // Predicated region
        $region13: #{tpu_custom_call.1} parent=11 // pred_check
          %p103 = pneg %p62
        $region14: #{tpu_custom_call.1} parent=11 // pred_check_branch
          %105 = sbr.rel (%p103) target = $region16
        $region15: #{tpu_custom_call.1} parent=11 // pred_region
          %s107 = ssub.s32 64, 64
          %108 = vsyncadd [#allocation6], %s107
          %s110 = sshll.u32 [#allocation5], 4
          %s111 = int_to_ptr.vmem [resolvable:$true] %s110
          %113 = dma.hbm_to_vmem [thread:$0]  %s1, 64, %s111, [#allocation6]
        $region16: #{tpu_custom_call.1} parent=11 // pred_fallthru
          _
      $region12: #{tpu_custom_call.1} parent=5 // pred_fallthru
        _
      %p114 = scmp.lt.s32.totalorder %s15, 2
      // Predicated region
      $region17: #{tpu_custom_call.1} parent=5 // pred_check
        %p115 = pneg %p114
      $region18: #{tpu_custom_call.1} parent=5 // pred_check_branch
        %117 = sbr.rel (%p115) target = $region20
      $region19: #{tpu_custom_call.1} parent=5 // pred_region
        // Predicated region
        $region21: #{tpu_custom_call.1} parent=19 // pred_check
          %p118 = pneg %p35
        $region22: #{tpu_custom_call.1} parent=19 // pred_check_branch
          %120 = sbr.rel (%p118) target = $region24
        $region23: #{tpu_custom_call.1} parent=19 // pred_region
          %s121 = sand.u32 %s25, 1
          %s122 = scalar_lea.sflag [#allocation3], %s121
          %s123 = sand.u32 %s25, 1
          %s124 = smul.addr %s123, 8
          %s125 = scalar_lea.vmem [#allocation2], %s124
          %s127 = ssub.s32 128, 128
          %128 = vsyncadd %s122, %s127
          %s129 = smul.addr %s15, 128
          %s130 = scalar_lea.hbm %s0, %s129
          %s132 = sshll.u32 %s125, 4
          %s133 = int_to_ptr.vmem [resolvable:$true] %s132
          %135 = dma.hbm_to_vmem [thread:$0]  %s130, 128, %s133, %s122
        $region24: #{tpu_custom_call.1} parent=19 // pred_fallthru
          _
      $region20: #{tpu_custom_call.1} parent=5 // pred_fallthru
        _
      %p136 = scmp.le.s32.totalorder 1, %s15
      %p137 = scmp.lt.s32.totalorder %s15, 3
      %p138 = pnand %p136, %p137
      %p139 = pneg %p138
      // Predicated region
      $region25: #{tpu_custom_call.1} parent=5 // pred_check
        _
      $region26: #{tpu_custom_call.1} parent=5 // pred_check_branch
        %141 = sbr.rel (%p138) target = $region28
      $region27: #{tpu_custom_call.1} parent=5 // pred_region
        %s142 = ssub.s32 %s15, 1
        %s143 = sand.u32 %s28, 1
        %s144 = scalar_lea.sflag [#allocation3], %s143
        %s145 = sand.u32 %s28, 1
        %s146 = smul.addr %s145, 8
        %s147 = scalar_lea.vmem [#allocation2], %s146
        // Predicated region
        $region29: #{tpu_custom_call.1} parent=27 // pred_check
          %p148 = pneg %p41
        $region30: #{tpu_custom_call.1} parent=27 // pred_check_branch
          %150 = sbr.rel (%p148) target = $region32
        $region31: #{tpu_custom_call.1} parent=27 // pred_region
          %151 = dma.done %s144, 128
        $region32: #{tpu_custom_call.1} parent=27 // pred_fallthru
          _
        // Predicated region
        $region33: #{tpu_custom_call.1} parent=27 // pred_check
          %p152 = pneg %p62
        $region34: #{tpu_custom_call.1} parent=27 // pred_check_branch
          %154 = sbr.rel (%p152) target = $region36
        $region35: #{tpu_custom_call.1} parent=27 // pred_region
          %155 = dma.done [#allocation6], 64
        $region36: #{tpu_custom_call.1} parent=27 // pred_fallthru
          _
        %s156 = sand.u32 %s28, 1
        %s157 = scalar_lea.sflag [#allocation3], %s156
        %s158 = sand.u32 %s28, 1
        %s159 = smul.addr %s158, 8
        %s160 = scalar_lea.vmem [#allocation2], %s159
        %p161 = pneg %p41
        %p162 = pneg %p38
        %p163 = pneg %p62
        %p164 = pneg %p59
        %p165 = pneg %p88
        %p166 = pneg %p85
        %s167 = sand.u32 %s75, 1
        %s168 = scalar_lea.sflag [#allocation4], %s167
        %s169 = sand.u32 %s75, 1
        %s170 = smul.addr %s169, 8
        %s171 = scalar_lea.vmem [#allocation7], %s170
        %v172 = vld [vmem:[%s147] sm:$0xff]
        %173 = vrot.lane.b32.xlu0 %v172, 1
        %v174 = vpop.permute.xlu0 %173
        %175 = vrot.lane.b32.xlu0 %v172, 2
        %v176 = vpop.permute.xlu0 %175
        %v177 = vld [vmem:[#allocation5] sm:$0x1]
        %v178 = vld [vmem:[#allocation5 + $0x1] sm:$0x1]
        %v179 = vld [vmem:[#allocation5 + $0x2] sm:$0x1]
        %v180 = vlaneseq
        %v181 = vshrl.u32 %v180, 7
        %v182 = vsub.s32 0, %v181
        %v183 = vrot.slane %v177, %v182
        %v184 = vmul.f32 %v183, %v176
        %v185 = vlaneseq
        %v186 = vshrl.u32 %v185, 7
        %v187 = vsub.s32 0, %v186
        %v188 = vrot.slane %v178, %v187
        %v189 = vmul.f32 %v188, %v174
        %v190 = vadd.f32 %v184, %v189
        %v191 = vlaneseq
        %v192 = vshrl.u32 %v191, 7
        %v193 = vsub.s32 0, %v192
        %v194 = vrot.slane %v179, %v193
        %v195 = vmul.f32 %v194, %v172
        %v196 = vadd.f32 %v190, %v195
        %197 = vst [vmem:[%s171] sm:$0xff] %v196
        %s198 = sand.u32 %s75, 1
        %s199 = scalar_lea.sflag [#allocation4], %s198
        %s200 = sand.u32 %s75, 1
        %s201 = smul.addr %s200, 8
        %s202 = scalar_lea.vmem [#allocation7], %s201
        // Predicated region
        $region37: #{tpu_custom_call.1} parent=27 // pred_check
          %p203 = pneg %p85
        $region38: #{tpu_custom_call.1} parent=27 // pred_check_branch
          %205 = sbr.rel (%p203) target = $region40
        $region39: #{tpu_custom_call.1} parent=27 // pred_region
          %s207 = ssub.s32 128, 128
          %208 = vsyncadd %s199, %s207
          %s209 = smul.addr %s20, 128
          %s210 = scalar_lea.hbm %s2, %s209
          %s212 = sshll.u32 %s202, 4
          %s213 = int_to_ptr.vmem [resolvable:$true] %s212
          %215 = dma.vmem_to_hbm [thread:$0]  %s213, 128, %s210, %s199
        $region40: #{tpu_custom_call.1} parent=27 // pred_fallthru
          _
      $region28: #{tpu_custom_call.1} parent=5 // pred_fallthru
        _
      %p216 = scmp.le.s32.totalorder 2, %s15
      // Predicated region
      $region41: #{tpu_custom_call.1} parent=5 // pred_check
        %p217 = pneg %p216
      $region42: #{tpu_custom_call.1} parent=5 // pred_check_branch
        %219 = sbr.rel (%p217) target = $region44
      $region43: #{tpu_custom_call.1} parent=5 // pred_region
        %s220 = ssub.s32 %s15, 2
        // Predicated region
        $region45: #{tpu_custom_call.1} parent=43 // pred_check
          %p221 = pneg %p91
        $region46: #{tpu_custom_call.1} parent=43 // pred_check_branch
          %223 = sbr.rel (%p221) target = $region48
        $region47: #{tpu_custom_call.1} parent=43 // pred_region
          %s224 = sand.u32 %s76, 1
          %s225 = scalar_lea.sflag [#allocation4], %s224
          %s226 = sand.u32 %s76, 1
          %s227 = smul.addr %s226, 8
          %s228 = scalar_lea.vmem [#allocation7], %s227
          %229 = dma.done %s225, 128
        $region48: #{tpu_custom_call.1} parent=43 // pred_fallthru
          _
      $region44: #{tpu_custom_call.1} parent=5 // pred_fallthru
        _
    $region6: #{tpu_custom_call.1} parent=1 // loop_footer
      %s19 = sadd.s32 1, %s15
    $region7: #{tpu_custom_call.1} parent=1 // loop_footer_branch
      %14 = sbr.rel target = $region3
    $region8: #{tpu_custom_call.1} parent=1 // loop_exit
      _
    %230 = vsyncpa [#allocation3], 1
    %s231 = scalar_lea.sflag [#allocation3], 1
    %232 = vsyncpa %s231, 1
    %233 = vsyncpa [#allocation6], 1
    %234 = vsyncpa [#allocation4], 1
    %s235 = scalar_lea.sflag [#allocation4], 1
    %236 = vsyncpa %s235, 1

</llo_original>
